<compile_context>
chip_gen: v5e
topology: v5e:2x2
jax: 0.10.0
libtpu: 0.0.40
codegen_flags: <defaults>
</compile_context>

<pallas_src>
import jax
import jax.numpy as jnp
from jax.experimental import pallas as pl
from jax.experimental.pallas import tpu as pltpu


def _row_sum_kernel(x_ref, o_ref, acc_ref):
    """x_ref: (TILE_T, TILE_D); o_ref: (TILE_T, 1); acc_ref: f32 (TILE_T, 1)."""
    k = pl.program_id(1)  # reduction (D) axis, innermost grid axis

    @pl.when(k == 0)
    def _init():
        acc_ref[...] = jnp.zeros_like(acc_ref)

    # f32 accumulation on the VPU regardless of input dtype.
    acc_ref[...] += jnp.sum(x_ref[...].astype(jnp.float32), axis=-1, keepdims=True)

    @pl.when(k == pl.num_programs(1) - 1)
    def _store():
        o_ref[...] = acc_ref[...].astype(o_ref.dtype)


def _vmem_tile_budget_bytes():
    """(per-input-buffer tile budget, vmem_limit_bytes) from the chip's VMEM."""
    try:
        cap = int(pltpu.get_tpu_info().vmem_capacity_bytes)
    except Exception:
        cap = 64 * 1024 * 1024  # be conservative (v7x-sized VMEM)
    if cap >= 100 * 1024 * 1024:
        # v5e / v6e: 128 MiB physical VMEM -> bigger tiles, raise scoped limit.
        return 8 * 1024 * 1024, 48 * 1024 * 1024
    # v7x: 64 MiB physical / 32 MiB default scoped -> stay inside the default.
    return 4 * 1024 * 1024, None


def _choose_tiles(T, D, itemsize, budget_bytes):
    """Pick (TILE_T, TILE_D) honoring the (8,128) tiling rules and VMEM budget."""
    sub = {1: 32, 2: 16}.get(itemsize, 8)  # min sublane multiple for this dtype

    # Reduction-axis tile: take the full feature dim whenever `sub` rows of it
    # fit in the budget; otherwise the largest multiple of 128 that divides D
    # exactly (exact divisibility keeps out-of-bounds padding out of the sum).
    if D * sub * itemsize <= budget_bytes or D <= 128:
        tile_d = D
    else:
        tile_d = D
        cap_cols = max(128, (budget_bytes // (sub * itemsize)) // 128 * 128)
        for cand in range(cap_cols, 0, -128):
            if D % cand == 0:
                tile_d = cand
                break

    # Row tile: as many rows as fit the budget, rounded down to the sublane
    # multiple (a full-dim block is always legal, so tiny T just uses T).
    if T <= sub:
        tile_t = T
    else:
        max_rows = max(sub, budget_bytes // (tile_d * itemsize))
        tile_t = max(sub, (min(T, max_rows) // sub) * sub)
    return tile_t, tile_d


def temporal_avg_pooling(x, *, force_pallas=False, max_tile_bytes=None):
    """Pallas equivalent of TemoralAvgPooling.forward: returns x[0].sum(dim=1)."""
    N, T, D = x.shape
    itemsize = jnp.dtype(x.dtype).itemsize

    # For toy sizes the per-step + launch overhead dominates; let XLA handle it.
    if not force_pallas and T * D * itemsize < (256 * 1024):
        return x[0].sum(axis=1)

    budget, vmem_limit = _vmem_tile_budget_bytes()
    if max_tile_bytes is not None:
        budget = max_tile_bytes
    tile_t, tile_d = _choose_tiles(T, D, itemsize, budget)

    grid = (pl.cdiv(T, tile_t), pl.cdiv(D, tile_d))

    out = pl.pallas_call(
        _row_sum_kernel,
        out_shape=jax.ShapeDtypeStruct((T, 1), x.dtype),
        grid=grid,
        in_specs=[
            # Leading batch dim is squeezed; block index 0 there => only x[0]
            # is ever DMA'd from HBM.
            pl.BlockSpec((pl.Squeezed(), tile_t, tile_d), lambda i, k: (0, i, k)),
        ],
        out_specs=pl.BlockSpec((tile_t, 1), lambda i, k: (i, 0)),
        scratch_shapes=[pltpu.VMEM((tile_t, 1), jnp.float32)],
        compiler_params=pltpu.CompilerParams(
            dimension_semantics=("parallel", "arbitrary"),
            vmem_limit_bytes=vmem_limit,
        ),
    )(x)
    return out.reshape((T,))


if __name__ == "__main__":
    key = jax.random.PRNGKey(0)
    k1, k2 = jax.random.split(key)

    # Small shapes consistent with the module: batch=2, seq=8, hidden=32.
    x = jax.random.normal(k1, (2, 8, 32), dtype=jnp.float32)
    y = jax.block_until_ready(temporal_avg_pooling(x, force_pallas=True))
    y_ref = x[0].sum(axis=1)
    assert y.shape == y_ref.shape == (8,)
    assert jnp.allclose(y, y_ref, atol=1e-5, rtol=1e-5)

    # Larger check that exercises the multi-tile (double-buffered) T path.
    x2 = jax.random.normal(k2, (2, 2048, 1024), dtype=jnp.float32)
    y2 = jax.block_until_ready(
        temporal_avg_pooling(x2, force_pallas=True, max_tile_bytes=1 << 20))
    y2_ref = x2[0].sum(axis=1)
    assert y2.shape == y2_ref.shape == (2048,)
    assert jnp.allclose(y2, y2_ref, atol=1e-3, rtol=1e-4)

    print("KERNEL_OK")
</pallas_src>

<mosaic_0001>
module attributes {stable_mosaic.version = 11 : i64} {
  func.func @_row_sum_kernel(%arg0: i32, %arg1: i32, %arg2: memref<1x8x32xf32, #tpu.memory_space<vmem>>, %arg3: memref<8x1xf32, #tpu.memory_space<vmem>>, %arg4: memref<8x1xf32, #tpu.memory_space<vmem>>) attributes {dimension_semantics = [#tpu.dimension_semantics<parallel>, #tpu.dimension_semantics<arbitrary>], iteration_bounds = array<i64: 1, 1>, scalar_prefetch = 0 : i64, scratch_operands = 1 : i64, tpu.core_type = #tpu.core_type<tc>, window_params = [{transform_indices = @transform_0, window_bounds = array<i64: 1, 8, 32>}, {transform_indices = @transform_1, window_bounds = array<i64: 8, 1>}]} {
    %c0_i32 = arith.constant 0 : i32
    %0 = arith.cmpi eq, %arg1, %c0_i32 : i32
    %1 = arith.extui %0 : i1 to i32
    %c0_i32_0 = arith.constant 0 : i32
    %2 = arith.cmpi ne, %1, %c0_i32_0 : i32
    scf.if %2 {
      %cst_9 = arith.constant 0.000000e+00 : f32
      %13 = vector.broadcast %cst_9 : f32 to vector<8x1xf32>
      %c0_10 = arith.constant 0 : index
      %c0_11 = arith.constant 0 : index
      %14 = vector.load %arg4[%c0_10, %c0_11] : memref<8x1xf32, #tpu.memory_space<vmem>>, vector<8x1xf32>
      tpu.vector_store %arg4[%c0_10, %c0_11], %13 {strides = array<i32>} : memref<8x1xf32, #tpu.memory_space<vmem>>, vector<8x1xf32>,
    } else {
    }
    %c0 = arith.constant 0 : index
    %c0_1 = arith.constant 0 : index
    %3 = vector.load %arg4[%c0, %c0_1] : memref<8x1xf32, #tpu.memory_space<vmem>>, vector<8x1xf32>
    %c0_2 = arith.constant 0 : index
    %c0_3 = arith.constant 0 : index
    %c0_4 = arith.constant 0 : index
    %4 = vector.load %arg2[%c0_2, %c0_3, %c0_4] : memref<1x8x32xf32, #tpu.memory_space<vmem>>, vector<1x8x32xf32>
    %5 = vector.shape_cast %4 : vector<1x8x32xf32> to vector<8x32xf32>
    %cst = arith.constant dense<0.000000e+00> : vector<8xf32>
    %6 = vector.multi_reduction <add>, %5, %cst [1] : vector<8x32xf32> to vector<8xf32>
    %7 = vector.shape_cast %6 : vector<8xf32> to vector<8x1xf32>
    %8 = arith.addf %3, %7 : vector<8x1xf32>
    %c0_5 = arith.constant 0 : index
    %c0_6 = arith.constant 0 : index
    %9 = vector.load %arg4[%c0_5, %c0_6] : memref<8x1xf32, #tpu.memory_space<vmem>>, vector<8x1xf32>
    tpu.vector_store %arg4[%c0_5, %c0_6], %8 {strides = array<i32>} : memref<8x1xf32, #tpu.memory_space<vmem>>, vector<8x1xf32>,
    %c0_i32_7 = arith.constant 0 : i32
    %10 = arith.cmpi eq, %arg1, %c0_i32_7 : i32
    %11 = arith.extui %10 : i1 to i32
    %c0_i32_8 = arith.constant 0 : i32
    %12 = arith.cmpi ne, %11, %c0_i32_8 : i32
    scf.if %12 {
      %c0_9 = arith.constant 0 : index
      %c0_10 = arith.constant 0 : index
      %13 = vector.load %arg4[%c0_9, %c0_10] : memref<8x1xf32, #tpu.memory_space<vmem>>, vector<8x1xf32>
      %c0_11 = arith.constant 0 : index
      %c0_12 = arith.constant 0 : index
      %14 = vector.load %arg3[%c0_11, %c0_12] : memref<8x1xf32, #tpu.memory_space<vmem>>, vector<8x1xf32>
      tpu.vector_store %arg3[%c0_11, %c0_12], %13 {strides = array<i32>} : memref<8x1xf32, #tpu.memory_space<vmem>>, vector<8x1xf32>,
    } else {
    }
    return
  }
  func.func @transform_0(%arg0: i32, %arg1: i32) -> (i32, i32, i32) {
    %c0_i32 = arith.constant 0 : i32
    %c0_i32_0 = arith.constant 0 : i32
    return %c0_i32, %arg0, %arg1 : i32, i32, i32
  }
  func.func @transform_1(%arg0: i32, %arg1: i32) -> (i32, i32) {
    %c0_i32 = arith.constant 0 : i32
    %c0_i32_0 = arith.constant 0 : i32
    return %arg0, %c0_i32 : i32, i32
  }
}

</mosaic_0001>

<llo_original>
// kernel: tpu_custom_call.1
$region0: #{tpu_custom_call.1}
  #allocation0 [shape = 'u32[]', space=smem, size = 0x4, offset = 0x4, fixed_abs, tag = 'smem constant byte address 0x4 - core index']
  #allocation1 [shape = 'u32[72,128]{1,0:T(1,128)}', space=vmem, size = 0x9000, scoped, tag = 'internal scratch']
  #allocation2 [shape = 'f32[8,1]{1,0:T(8,128)}', space=vmem, size = 0x1000, scoped, tag = 'scratch operand']
  %s0 = inlined_call_operand.hbm [shape: f32[2,8,32], index: 0, kind: input, shape index: {}]
  %s1 = inlined_call_operand.vmem [shape: f32[8,1], index: 1, kind: output, shape index: {}]
  %s2 = sld [smem:[#allocation0]]
  $region26: #{tpu_custom_call.1} parent=0
    _
  %s4 = ssub.s32 1, %s2
  %s5 = scalar_select 0, %s4, %s2
  $region1: #{tpu_custom_call.1} parent=0
    #allocation3 [shape = 'u8[4096]{0}', space=vmem, size = 0x1000, scoped, tag = 'input window, operand 0, single buffered']
    #allocation4 [shape = 's32[1]{0}', space=sflag, size = 0x4, scoped, tag = 'scoped memory for tpu_custom_call.1']
    %6 = vsyncpa [#allocation4], 0
    // Predicated region
    $region2: #{tpu_custom_call.1} parent=1 // pred_check
      _
    $region3: #{tpu_custom_call.1} parent=1 // pred_check_branch
      %8 = sbr.rel (0) target = $region5
    $region4: #{tpu_custom_call.1} parent=1 // pred_region
      %10 = vsyncadd [#allocation4], 0
      %s12 = sshll.u32 %s0, 4
      %s13 = int_to_ptr.hbm [resolvable:$true] %s12
      %s14 = sshll.u32 [#allocation3], 4
      %s15 = int_to_ptr.vmem [resolvable:$true] %s14
      %17 = dma.hbm_to_vmem [thread:$0]  %s13, 128, %s15, [#allocation4]
    $region5: #{tpu_custom_call.1} parent=1 // pred_fallthru
      _
    // Predicated region
    $region6: #{tpu_custom_call.1} parent=1 // pred_check
      _
    $region7: #{tpu_custom_call.1} parent=1 // pred_check_branch
      %19 = sbr.rel (0) target = $region9
    $region8: #{tpu_custom_call.1} parent=1 // pred_region
      %21 = dma.done [#allocation4], 128
    $region9: #{tpu_custom_call.1} parent=1 // pred_fallthru
      _
    %p22 = scmp.eq.s32.totalorder 0, 0
    // Predicated region
    $region10: #{tpu_custom_call.1} parent=1 // pred_check
      %p23 = pneg %p22
    $region11: #{tpu_custom_call.1} parent=1 // pred_check_branch
      %25 = sbr.rel (%p23) target = $region13
    $region12: #{tpu_custom_call.1} parent=1 // pred_region
      %vm26 = vcmask 7168
      %27 = vst.msk [vmem:[#allocation2] sm:$0xff] %vm26, 0.0
    $region13: #{tpu_custom_call.1} parent=1 // pred_fallthru
      _
    %v28 = vld [vmem:[#allocation2] sm:$0xff]
    %v29 = vld [vmem:[#allocation3] sm:$0xff]
    %vm30 = vcmask 261120
    %v31 = vsel %vm30, %v29, 0.0
    %32 = vadd.xlane.f32.xlu0 %v31
    %v33 = vpop.xlane.xlu0 %32
    %v34 = vadd.f32 %v28, %v33
    %vm35 = vcmask 7168
    %36 = vst.msk [vmem:[#allocation2] sm:$0xff] %vm35, %v34
    // Predicated region
    $region14: #{tpu_custom_call.1} parent=1 // pred_check
      %p37 = pneg %p22
    $region15: #{tpu_custom_call.1} parent=1 // pred_check_branch
      %39 = sbr.rel (%p37) target = $region17
    $region16: #{tpu_custom_call.1} parent=1 // pred_region
      %v40 = vld [vmem:[#allocation2] sm:$0xff]
      %41 = vst.msk [vmem:[%s1] sm:$0xff] %vm35, %v40
    $region17: #{tpu_custom_call.1} parent=1 // pred_fallthru
      _
    // Predicated region
    $region18: #{tpu_custom_call.1} parent=1 // pred_check
      _
    $region19: #{tpu_custom_call.1} parent=1 // pred_check_branch
      %43 = sbr.rel (0) target = $region21
    $region20: #{tpu_custom_call.1} parent=1 // pred_region
      _
    $region21: #{tpu_custom_call.1} parent=1 // pred_fallthru
      _
    // Predicated region
    $region22: #{tpu_custom_call.1} parent=1 // pred_check
      _
    $region23: #{tpu_custom_call.1} parent=1 // pred_check_branch
      %45 = sbr.rel (0) target = $region25
    $region24: #{tpu_custom_call.1} parent=1 // pred_region
      _
    $region25: #{tpu_custom_call.1} parent=1 // pred_fallthru
      _
    %46 = vsyncpa [#allocation4], 1

</llo_original>
